<compile_context>
chip_gen: v7x
topology: tpu7x:2x2x1
jax: 0.10.0
libtpu: 0.0.40
codegen_flags: <defaults>
</compile_context>

<pallas_src>
import jax
import jax.numpy as jnp
from jax.experimental import pallas as pl
from jax.experimental.pallas import tpu as pltpu


def _plastic_step(eta, inp, yin, yin_col, w, alpha, hebb):
    """One plasticNet step on VMEM-resident values.

    inp, yin : (1, N)   yin_col : (N, 1)   w, alpha, hebb : (N, N)
    eta      : scalar (read from SMEM)
    """
    # clamps: 1.0 where input is nonzero (the torch.nonzero / clamps[zz]=1 mask).
    clamps = (inp != 0.0).astype(jnp.float32)                 # (1, N)
    # Recurrent pre-activation on the MXU.
    pre = jnp.dot(yin, w + alpha * hebb,
                  preferred_element_type=jnp.float32)          # (1, N)
    yout = jnp.tanh(pre) * (1.0 - clamps) + inp * clamps       # (1, N)
    # Outer product yin^T @ yout as a pure-VPU broadcast multiply
    # (no K=1 MXU pass, no result-FIFO drain, no in-kernel relayout).
    outer = yin_col * yout                                     # (N, N)
    hebb_new = outer * eta + (1.0 - eta) * hebb                # (N, N)
    return yout, hebb_new


# ---------------------------------------------------------------------------
# Single-step kernel (exact module forward), hebb aliased in place.
# ---------------------------------------------------------------------------
def _plastic_step_kernel(eta_ref, inp_ref, yin_ref, yin_col_ref, hebb_ref,
                         w_ref, alpha_ref, yout_ref, hebb_out_ref):
    eta = eta_ref[0]
    yout, hebb_new = _plastic_step(eta, inp_ref[...], yin_ref[...],
                                   yin_col_ref[...], w_ref[...],
                                   alpha_ref[...], hebb_ref[...])
    yout_ref[...] = yout.astype(yout_ref.dtype)
    hebb_out_ref[...] = hebb_new.astype(hebb_out_ref.dtype)


def plastic_forward(w, alpha, eta, inp, yin, hebb):
    """Single plasticNet step. Returns (yout, hebb_new)."""
    n = w.shape[0]
    yin_col = jnp.swapaxes(yin, -1, -2)                        # (N, 1) column form
    vmem = pl.BlockSpec(memory_space=pltpu.MemorySpace.VMEM)
    smem = pl.BlockSpec(memory_space=pltpu.MemorySpace.SMEM)
    cost = pl.CostEstimate(flops=7 * n * n,
                           transcendentals=n,
                           bytes_accessed=4 * (4 * n * n + 5 * n))
    return pl.pallas_call(
        _plastic_step_kernel,
        out_shape=(
            jax.ShapeDtypeStruct((1, n), jnp.float32),         # yout
            jax.ShapeDtypeStruct((n, n), jnp.float32),         # hebb_new
        ),
        in_specs=[smem, vmem, vmem, vmem, vmem, vmem, vmem],
        out_specs=(vmem, vmem),
        # hebb (input index 4) aliases hebb_new (output index 1): no separate
        # HBM output allocation / extra (N,N) writeback for the trace.
        input_output_aliases={4: 1},
        cost_estimate=cost,
    )(eta, inp, yin, yin_col, hebb, w, alpha)


# ---------------------------------------------------------------------------
# Fused T-step kernel: one pallas_call for the whole recurrence over hebb.
# ---------------------------------------------------------------------------
def _plastic_seq_kernel(eta_ref, inp_ref, yin_ref, yin_col_ref, w_ref,
                        alpha_ref, hebb0_ref, yout_ref, hebb_out_ref,
                        hebb_sc):
    t = pl.program_id(0)

    @pl.when(t == 0)
    def _():
        hebb_sc[...] = hebb0_ref[...]

    eta = eta_ref[0]
    yout, hebb_new = _plastic_step(eta, inp_ref[...], yin_ref[...],
                                   yin_col_ref[...], w_ref[...],
                                   alpha_ref[...], hebb_sc[...])
    yout_ref[...] = yout.astype(yout_ref.dtype)
    hebb_sc[...] = hebb_new

    @pl.when(t == pl.num_programs(0) - 1)
    def _():
        hebb_out_ref[...] = hebb_sc[...].astype(hebb_out_ref.dtype)


def plastic_forward_sequence(w, alpha, eta, inps, yins, hebb0):
    """Applies the plasticNet forward T times with hebb chained through the
    steps, all inside one pallas_call.  inps/yins: (T, 1, N).
    Returns (youts (T,1,N), hebb_final (N,N))."""
    t_steps, _, n = inps.shape
    yin_cols = jnp.swapaxes(yins, -1, -2)                      # (T, N, 1)

    grid_spec = pltpu.PrefetchScalarGridSpec(
        num_scalar_prefetch=0,
        grid=(t_steps,),
        in_specs=[
            # eta scalar, kept in SMEM.
            pl.BlockSpec((1,), lambda t: (0,),
                         memory_space=pltpu.MemorySpace.SMEM),
            pl.BlockSpec((None, 1, n), lambda t: (t, 0, 0)),   # inp_t   (streamed)
            pl.BlockSpec((None, 1, n), lambda t: (t, 0, 0)),   # yin_t   (streamed)
            pl.BlockSpec((None, n, 1), lambda t: (t, 0, 0)),   # yin_col_t (streamed)
            pl.BlockSpec((n, n), lambda t: (0, 0)),            # w      (VMEM-resident)
            pl.BlockSpec((n, n), lambda t: (0, 0)),            # alpha  (VMEM-resident)
            pl.BlockSpec((n, n), lambda t: (0, 0)),            # hebb0  (fetched once)
        ],
        out_specs=(
            pl.BlockSpec((None, 1, n), lambda t: (t, 0, 0)),   # yout_t
            pl.BlockSpec((n, n), lambda t: (0, 0)),            # hebb_final (written once)
        ),
        scratch_shapes=[pltpu.VMEM((n, n), jnp.float32)],      # hebb carry across steps
    )
    cost = pl.CostEstimate(flops=7 * n * n * t_steps,
                           transcendentals=n * t_steps,
                           bytes_accessed=4 * (4 * n * n + 5 * n * t_steps))
    return pl.pallas_call(
        _plastic_seq_kernel,
        out_shape=(
            jax.ShapeDtypeStruct((t_steps, 1, n), jnp.float32),
            jax.ShapeDtypeStruct((n, n), jnp.float32),
        ),
        grid_spec=grid_spec,
        compiler_params=pltpu.CompilerParams(
            # hebb carries across the time axis -> sequential ("arbitrary").
            dimension_semantics=("arbitrary",)),
        cost_estimate=cost,
    )(eta, inps, yins, yin_cols, w, alpha, hebb0)


if __name__ == "__main__":
    N = 32   # neurons
    T = 8    # fused recurrent steps

    key = jax.random.PRNGKey(0)
    k_w, k_a, k_in, k_mask, k_yin = jax.random.split(key, 5)

    # Parameter init mirroring __init__: 0.01*randn / 0.01*ones.
    w = 0.01 * jax.random.normal(k_w, (N, N), dtype=jnp.float32)
    alpha = 0.01 * jax.random.normal(k_a, (N, N), dtype=jnp.float32)
    eta = 0.01 * jnp.ones((1,), dtype=jnp.float32)

    # Sparse inputs (non-trivial clamps mask), external yin per step,
    # initial zero Hebbian trace.
    inps = jax.random.normal(k_in, (T, 1, N), dtype=jnp.float32)
    mask = jax.random.bernoulli(k_mask, 0.3, (T, 1, N))
    inps = jnp.where(mask, inps, 0.0)
    yins = jax.random.normal(k_yin, (T, 1, N), dtype=jnp.float32)
    hebb0 = jnp.zeros((N, N), dtype=jnp.float32)

    # ---- pure-JAX reference ------------------------------------------------
    def ref_step(inp, yin, hebb):
        clamps = (inp != 0.0).astype(jnp.float32)
        yout = jnp.tanh(yin @ (w + alpha * hebb)) * (1.0 - clamps) + inp * clamps
        hebb_new = (yin.T @ yout) * eta[0] + (1.0 - eta[0]) * hebb
        return yout, hebb_new

    yout_ref0, hebb_ref0 = ref_step(inps[0], yins[0], hebb0)

    hebb_r = hebb0
    youts_ref = []
    for t in range(T):
        yo, hebb_r = ref_step(inps[t], yins[t], hebb_r)
        youts_ref.append(yo)
    youts_ref = jnp.stack(youts_ref)
    hebb_ref_T = hebb_r

    # ---- Pallas kernels ----------------------------------------------------
    youts, hebb_T = plastic_forward_sequence(w, alpha, eta, inps, yins, hebb0)
    yout0, hebb0_new = plastic_forward(w, alpha, eta, inps[0], yins[0], hebb0)
    jax.block_until_ready((youts, hebb_T, yout0, hebb0_new))

    assert yout0.shape == (1, N) and hebb0_new.shape == (N, N)
    assert youts.shape == (T, 1, N) and hebb_T.shape == (N, N)
    assert jnp.allclose(yout0, yout_ref0, atol=1e-5, rtol=1e-5)
    assert jnp.allclose(hebb0_new, hebb_ref0, atol=1e-5, rtol=1e-5)
    assert jnp.allclose(youts, youts_ref, atol=1e-5, rtol=1e-5)
    assert jnp.allclose(hebb_T, hebb_ref_T, atol=1e-5, rtol=1e-5)

    print("KERNEL_OK")
</pallas_src>

<mosaic_0001>
module attributes {stable_mosaic.version = 11 : i64} {
  func.func @_plastic_seq_kernel(%arg0: i32, %arg1: memref<1xf32, #tpu.memory_space<smem>>, %arg2: memref<1x1x32xf32, #tpu.memory_space<vmem>>, %arg3: memref<1x1x32xf32, #tpu.memory_space<vmem>>, %arg4: memref<1x32x1xf32, #tpu.memory_space<vmem>>, %arg5: memref<32x32xf32, #tpu.memory_space<vmem>>, %arg6: memref<32x32xf32, #tpu.memory_space<vmem>>, %arg7: memref<32x32xf32, #tpu.memory_space<vmem>>, %arg8: memref<1x1x32xf32, #tpu.memory_space<vmem>>, %arg9: memref<32x32xf32, #tpu.memory_space<vmem>>, %arg10: memref<32x32xf32, #tpu.memory_space<vmem>>) attributes {dimension_semantics = [#tpu.dimension_semantics<arbitrary>], iteration_bounds = array<i64: 8>, scalar_prefetch = 0 : i64, scratch_operands = 1 : i64, tpu.core_type = #tpu.core_type<tc>, window_params = [{transform_indices = @transform_0, window_bounds = array<i64: 1>}, {transform_indices = @transform_1, window_bounds = array<i64: 1, 1, 32>}, {transform_indices = @transform_2, window_bounds = array<i64: 1, 1, 32>}, {transform_indices = @transform_3, window_bounds = array<i64: 1, 32, 1>}, {pipeline_mode = #tpu.pipeline_mode<synchronous>, transform_indices = @transform_4, window_bounds = array<i64: 32, 32>}, {pipeline_mode = #tpu.pipeline_mode<synchronous>, transform_indices = @transform_5, window_bounds = array<i64: 32, 32>}, {pipeline_mode = #tpu.pipeline_mode<synchronous>, transform_indices = @transform_6, window_bounds = array<i64: 32, 32>}, {transform_indices = @transform_7, window_bounds = array<i64: 1, 1, 32>}, {pipeline_mode = #tpu.pipeline_mode<synchronous>, transform_indices = @transform_8, window_bounds = array<i64: 32, 32>}]} {
    %c0_i32 = arith.constant 0 : i32
    %0 = arith.cmpi eq, %arg0, %c0_i32 : i32
    %1 = arith.extui %0 : i1 to i32
    %c0_i32_0 = arith.constant 0 : i32
    %2 = arith.cmpi ne, %1, %c0_i32_0 : i32
    scf.if %2 {
      %c0_25 = arith.constant 0 : index
      %c0_26 = arith.constant 0 : index
      %42 = vector.load %arg7[%c0_25, %c0_26] : memref<32x32xf32, #tpu.memory_space<vmem>>, vector<32x32xf32>
      %c0_27 = arith.constant 0 : index
      %c0_28 = arith.constant 0 : index
      %43 = vector.load %arg10[%c0_27, %c0_28] : memref<32x32xf32, #tpu.memory_space<vmem>>, vector<32x32xf32>
      tpu.vector_store %arg10[%c0_27, %c0_28], %42 {strides = array<i32>} : memref<32x32xf32, #tpu.memory_space<vmem>>, vector<32x32xf32>,
    } else {
    }
    %c0 = arith.constant 0 : index
    %3 = memref.load %arg1[%c0] : memref<1xf32, #tpu.memory_space<smem>>
    %c0_1 = arith.constant 0 : index
    %c0_2 = arith.constant 0 : index
    %c0_3 = arith.constant 0 : index
    %4 = vector.load %arg2[%c0_1, %c0_2, %c0_3] : memref<1x1x32xf32, #tpu.memory_space<vmem>>, vector<1x1x32xf32>
    %5 = vector.shape_cast %4 : vector<1x1x32xf32> to vector<1x32xf32>
    %c0_4 = arith.constant 0 : index
    %c0_5 = arith.constant 0 : index
    %c0_6 = arith.constant 0 : index
    %6 = vector.load %arg3[%c0_4, %c0_5, %c0_6] : memref<1x1x32xf32, #tpu.memory_space<vmem>>, vector<1x1x32xf32>
    %7 = vector.shape_cast %6 : vector<1x1x32xf32> to vector<1x32xf32>
    %c0_7 = arith.constant 0 : index
    %c0_8 = arith.constant 0 : index
    %c0_9 = arith.constant 0 : index
    %8 = vector.load %arg4[%c0_7, %c0_8, %c0_9] : memref<1x32x1xf32, #tpu.memory_space<vmem>>, vector<1x32x1xf32>
    %9 = vector.shape_cast %8 : vector<1x32x1xf32> to vector<32x1xf32>
    %c0_10 = arith.constant 0 : index
    %c0_11 = arith.constant 0 : index
    %10 = vector.load %arg5[%c0_10, %c0_11] : memref<32x32xf32, #tpu.memory_space<vmem>>, vector<32x32xf32>
    %c0_12 = arith.constant 0 : index
    %c0_13 = arith.constant 0 : index
    %11 = vector.load %arg6[%c0_12, %c0_13] : memref<32x32xf32, #tpu.memory_space<vmem>>, vector<32x32xf32>
    %c0_14 = arith.constant 0 : index
    %c0_15 = arith.constant 0 : index
    %12 = vector.load %arg10[%c0_14, %c0_15] : memref<32x32xf32, #tpu.memory_space<vmem>>, vector<32x32xf32>
    %cst = arith.constant 0.000000e+00 : f32
    %13 = vector.broadcast %cst : f32 to vector<1x32xf32>
    %14 = arith.cmpf one, %5, %13 : vector<1x32xf32>
    %15 = arith.extui %14 : vector<1x32xi1> to vector<1x32xi32>
    %16 = arith.sitofp %15 : vector<1x32xi32> to vector<1x32xf32>
    %17 = arith.mulf %11, %12 : vector<32x32xf32>
    %18 = arith.addf %10, %17 : vector<32x32xf32>
    %cst_16 = arith.constant dense<0.000000e+00> : vector<1x32xf32>
    %19 = tpu.matmul %7, %18, %cst_16 {dimension_numbers = #tpu.dot_dimension_numbers<[1], [0], [0], [1], [0, 0, 1, 1], [], []>} : vector<1x32xf32>, vector<32x32xf32>, vector<1x32xf32> -> vector<1x32xf32>
    %20 = math.tanh %19 : vector<1x32xf32>
    %cst_17 = arith.constant 1.000000e+00 : f32
    %21 = vector.broadcast %cst_17 : f32 to vector<1x32xf32>
    %22 = arith.subf %21, %16 : vector<1x32xf32>
    %23 = arith.mulf %20, %22 : vector<1x32xf32>
    %24 = arith.mulf %5, %16 : vector<1x32xf32>
    %25 = arith.addf %23, %24 : vector<1x32xf32>
    %26 = vector.broadcast %9 : vector<32x1xf32> to vector<32x32xf32>
    %27 = vector.broadcast %25 : vector<1x32xf32> to vector<32x32xf32>
    %28 = arith.mulf %26, %27 : vector<32x32xf32>
    %29 = vector.broadcast %3 : f32 to vector<32x32xf32>
    %30 = arith.mulf %28, %29 : vector<32x32xf32>
    %cst_18 = arith.constant 1.000000e+00 : f32
    %31 = arith.subf %cst_18, %3 : f32
    %32 = vector.broadcast %31 : f32 to vector<32x32xf32>
    %33 = arith.mulf %32, %12 : vector<32x32xf32>
    %34 = arith.addf %30, %33 : vector<32x32xf32>
    %c0_19 = arith.constant 0 : index
    %c0_20 = arith.constant 0 : index
    %c0_21 = arith.constant 0 : index
    %35 = vector.load %arg8[%c0_19, %c0_20, %c0_21] : memref<1x1x32xf32, #tpu.memory_space<vmem>>, vector<1x1x32xf32>
    %36 = vector.shape_cast %35 : vector<1x1x32xf32> to vector<1x32xf32>
    %37 = vector.shape_cast %25 : vector<1x32xf32> to vector<1x1x32xf32>
    tpu.vector_store %arg8[%c0_19, %c0_20, %c0_21], %37 {strides = array<i32>} : memref<1x1x32xf32, #tpu.memory_space<vmem>>, vector<1x1x32xf32>,
    %c0_22 = arith.constant 0 : index
    %c0_23 = arith.constant 0 : index
    %38 = vector.load %arg10[%c0_22, %c0_23] : memref<32x32xf32, #tpu.memory_space<vmem>>, vector<32x32xf32>
    tpu.vector_store %arg10[%c0_22, %c0_23], %34 {strides = array<i32>} : memref<32x32xf32, #tpu.memory_space<vmem>>, vector<32x32xf32>,
    %c7_i32 = arith.constant 7 : i32
    %39 = arith.cmpi eq, %arg0, %c7_i32 : i32
    %40 = arith.extui %39 : i1 to i32
    %c0_i32_24 = arith.constant 0 : i32
    %41 = arith.cmpi ne, %40, %c0_i32_24 : i32
    scf.if %41 {
      %c0_25 = arith.constant 0 : index
      %c0_26 = arith.constant 0 : index
      %42 = vector.load %arg10[%c0_25, %c0_26] : memref<32x32xf32, #tpu.memory_space<vmem>>, vector<32x32xf32>
      %c0_27 = arith.constant 0 : index
      %c0_28 = arith.constant 0 : index
      %43 = vector.load %arg9[%c0_27, %c0_28] : memref<32x32xf32, #tpu.memory_space<vmem>>, vector<32x32xf32>
      tpu.vector_store %arg9[%c0_27, %c0_28], %42 {strides = array<i32>} : memref<32x32xf32, #tpu.memory_space<vmem>>, vector<32x32xf32>,
    } else {
    }
    return
  }
  func.func @transform_0(%arg0: i32) -> i32 {
    %c0_i32 = arith.constant 0 : i32
    %c0_i32_0 = arith.constant 0 : i32
    return %c0_i32 : i32
  }
  func.func @transform_1(%arg0: i32) -> (i32, i32, i32) {
    %c0_i32 = arith.constant 0 : i32
    %c0_i32_0 = arith.constant 0 : i32
    %c0_i32_1 = arith.constant 0 : i32
    return %arg0, %c0_i32, %c0_i32_0 : i32, i32, i32
  }
  func.func @transform_2(%arg0: i32) -> (i32, i32, i32) {
    %c0_i32 = arith.constant 0 : i32
    %c0_i32_0 = arith.constant 0 : i32
    %c0_i32_1 = arith.constant 0 : i32
    return %arg0, %c0_i32, %c0_i32_0 : i32, i32, i32
  }
  func.func @transform_3(%arg0: i32) -> (i32, i32, i32) {
    %c0_i32 = arith.constant 0 : i32
    %c0_i32_0 = arith.constant 0 : i32
    %c0_i32_1 = arith.constant 0 : i32
    return %arg0, %c0_i32, %c0_i32_0 : i32, i32, i32
  }
  func.func @transform_4(%arg0: i32) -> (i32, i32) {
    %c0_i32 = arith.constant 0 : i32
    %c0_i32_0 = arith.constant 0 : i32
    %c0_i32_1 = arith.constant 0 : i32
    return %c0_i32, %c0_i32_0 : i32, i32
  }
  func.func @transform_5(%arg0: i32) -> (i32, i32) {
    %c0_i32 = arith.constant 0 : i32
    %c0_i32_0 = arith.constant 0 : i32
    %c0_i32_1 = arith.constant 0 : i32
    return %c0_i32, %c0_i32_0 : i32, i32
  }
  func.func @transform_6(%arg0: i32) -> (i32, i32) {
    %c0_i32 = arith.constant 0 : i32
    %c0_i32_0 = arith.constant 0 : i32
    %c0_i32_1 = arith.constant 0 : i32
    return %c0_i32, %c0_i32_0 : i32, i32
  }
  func.func @transform_7(%arg0: i32) -> (i32, i32, i32) {
    %c0_i32 = arith.constant 0 : i32
    %c0_i32_0 = arith.constant 0 : i32
    %c0_i32_1 = arith.constant 0 : i32
    return %arg0, %c0_i32, %c0_i32_0 : i32, i32, i32
  }
  func.func @transform_8(%arg0: i32) -> (i32, i32) {
    %c0_i32 = arith.constant 0 : i32
    %c0_i32_0 = arith.constant 0 : i32
    %c0_i32_1 = arith.constant 0 : i32
    return %c0_i32, %c0_i32_0 : i32, i32
  }
}

</mosaic_0001>

<llo_original>
// kernel: tpu_custom_call.1
$region0: #{tpu_custom_call.1}
  #allocation0 [shape = 'u32[]', space=smem, size = 0x4, offset = 0x4, fixed_abs, tag = 'smem constant byte address 0x4 - core index']
  #allocation1 [shape = 'u32[144,128]{1,0:T(1,128)}', space=vmem, size = 0x12000, scoped, tag = 'internal scratch']
  #allocation2 [shape = 'f32[32,32]{1,0:T(8,128)}', space=vmem, size = 0x4000, scoped, tag = 'scratch operand']
  #allocation3 [shape = 'f32[1]{0:T(128)S(6)}', space=smem, size = 0x200, scoped, tag = 'scoped memory for tpu_custom_call.1']
  %s0 = inlined_call_operand.<no memory space> [shape: f32[1], index: 0, kind: input, shape index: {}]
  %s1 = inlined_call_operand.vmem [shape: f32[8,1,32], index: 1, kind: input, shape index: {}]
  %s2 = inlined_call_operand.vmem [shape: f32[8,1,32], index: 2, kind: input, shape index: {}]
  %s3 = inlined_call_operand.vmem [shape: f32[8,32,1], index: 3, kind: input, shape index: {}]
  %s4 = inlined_call_operand.vmem [shape: f32[32,32], index: 4, kind: input, shape index: {}]
  %s5 = inlined_call_operand.vmem [shape: f32[32,32], index: 5, kind: input, shape index: {}]
  %s6 = inlined_call_operand.vmem [shape: f32[32,32], index: 6, kind: input, shape index: {}]
  %s7 = inlined_call_operand.hbm [shape: f32[8,1,32], index: 7, kind: output, shape index: {0}]
  %s8 = inlined_call_operand.hbm [shape: f32[32,32], index: 8, kind: output, shape index: {1}]
  %9 = xla_tuple %s7, %s8
  %s10 = sld [smem:[#allocation0]]
  $region77: #{tpu_custom_call.1} parent=0
    _
  %s12 = ssub.s32 1, %s10
  %s13 = scalar_select 0, %s12, %s10
  %14 = sst [smem:[#allocation3]] %s0
  $region1: #{tpu_custom_call.1} parent=0
    #allocation4 [shape = 'u8[1024]{0}', space=vmem, size = 0x400, scoped, tag = 'output window, operand 0']
    #allocation5 [shape = 's32[2]{0}', space=sflag, size = 0x8, scoped, tag = 'scoped memory for tpu_custom_call.1']
    #allocation6 [shape = 'u8[16384]{0}', space=vmem, size = 0x4000, scoped, tag = 'output window, operand 1, single buffered']
    #allocation7 [shape = 's32[1]{0}', space=sflag, size = 0x4, scoped, tag = 'scoped memory for tpu_custom_call.1']
    %15 = vsyncpa [#allocation5], 0
    %s16 = scalar_lea.sflag [#allocation5], 1
    %17 = vsyncpa %s16, 0
    %18 = vsyncpa [#allocation7], 0
    loop: start=0, step=1, limit=10
    $region2: #{tpu_custom_call.1} parent=1 // loop_pre_header
      _
    $region3: #{tpu_custom_call.1} parent=1 // loop_header
      %s20 = sphi 0, %s24
      %p21 = scmp.ge.s32.totalorder %s20, 10
      %s28 = sphi 0, %s28
      %s30 = sphi 0, %s28
      %s31 = sphi 0, %s30
      %s45 = sphi 0, %s31
      %s51 = sphi 0, %s53
      %s54 = sphi 0, %s51
      %s55 = sphi 0, %s54
      %s71 = sphi 0, %s55
      %s77 = sphi 0, %s79
      %s80 = sphi 0, %s77
      %s81 = sphi 0, %s80
      %s97 = sphi 0, %s81
      %s103 = sphi 0, %s105
      %s106 = sphi 0, %s103
      %s107 = sphi 0, %s106
      %s123 = sphi 0, %s107
      %s127 = sphi 0, %s127
      %s129 = sphi 0, %s127
      %s130 = sphi 0, %s129
      %s144 = sphi 0, %s130
      %s148 = sphi 0, %s148
      %s150 = sphi 0, %s148
      %s151 = sphi 0, %s150
      %s165 = sphi 0, %s151
      %s169 = sphi 0, %s169
      %s171 = sphi 0, %s169
      %s172 = sphi 0, %s171
      %s186 = sphi 0, %s172
      %s192 = sphi 0, %s194
      %s195 = sphi 0, %s192
      %s196 = sphi 0, %s195
      %s212 = sphi 0, %s196
      %s216 = sphi 0, %s216
      %s218 = sphi 0, %s216
      %s219 = sphi 0, %s218
      %s233 = sphi 0, %s219
    $region4: #{tpu_custom_call.1} parent=1 // loop_header_branch
      %23 = sbr.rel (%p21) target = $region8
    $region5: #{tpu_custom_call.1} parent=1 // loop_body
      %s25 = ssub.s32 %s20, 1
      %s26 = ssub.s32 %s20, 2
      %s27 = sadd.s32 %s20, 1
      %s29 = sadd.s32 %s28, 1
      %p32 = scmp.eq.s32.totalorder %s20, 7
      %p33 = scmp.ne.s32.totalorder %s28, %s30
      %p34 = scmp.eq.s32.totalorder %s20, 0
      %p35 = por %p33, %p34
      %p36 = scmp.ne.s32.totalorder %s28, %s30
      %p37 = scmp.eq.s32.totalorder %s25, 7
      %p38 = por %p36, %p37
      %p39 = scmp.ne.s32.totalorder %s30, %s31
      %p40 = scmp.eq.s32.totalorder %s25, 0
      %p41 = por %p39, %p40
      %p42 = scmp.ne.s32.totalorder %s30, %s31
      %p43 = scmp.eq.s32.totalorder %s26, 7
      %p44 = por %p42, %p43
      %p46 = scmp.ne.s32.totalorder %s31, %s45
      %p47 = scmp.eq.s32.totalorder %s26, 0
      %p48 = por %p46, %p47
      %s49 = ssub.s32 %s20, %s27
      %p50 = scmp.eq.s32.totalorder %s49, 0
      %s52 = sadd.s32 %s51, 1
      %s53 = scalar_select %p50, %s51, %s52
      %p56 = pneg %p50
      %p57 = scmp.eq.s32.totalorder %s20, 7
      %p58 = por %p56, %p57
      %p59 = scmp.ne.s32.totalorder %s51, %s54
      %p60 = scmp.eq.s32.totalorder %s20, 0
      %p61 = por %p59, %p60
      %p62 = scmp.ne.s32.totalorder %s51, %s54
      %p63 = scmp.eq.s32.totalorder %s25, 7
      %p64 = por %p62, %p63
      %p65 = scmp.ne.s32.totalorder %s54, %s55
      %p66 = scmp.eq.s32.totalorder %s25, 0
      %p67 = por %p65, %p66
      %p68 = scmp.ne.s32.totalorder %s54, %s55
      %p69 = scmp.eq.s32.totalorder %s26, 7
      %p70 = por %p68, %p69
      %p72 = scmp.ne.s32.totalorder %s55, %s71
      %p73 = scmp.eq.s32.totalorder %s26, 0
      %p74 = por %p72, %p73
      %s75 = ssub.s32 %s20, %s27
      %p76 = scmp.eq.s32.totalorder %s75, 0
      %s78 = sadd.s32 %s77, 1
      %s79 = scalar_select %p76, %s77, %s78
      %p82 = pneg %p76
      %p83 = scmp.eq.s32.totalorder %s20, 7
      %p84 = por %p82, %p83
      %p85 = scmp.ne.s32.totalorder %s77, %s80
      %p86 = scmp.eq.s32.totalorder %s20, 0
      %p87 = por %p85, %p86
      %p88 = scmp.ne.s32.totalorder %s77, %s80
      %p89 = scmp.eq.s32.totalorder %s25, 7
      %p90 = por %p88, %p89
      %p91 = scmp.ne.s32.totalorder %s80, %s81
      %p92 = scmp.eq.s32.totalorder %s25, 0
      %p93 = por %p91, %p92
      %p94 = scmp.ne.s32.totalorder %s80, %s81
      %p95 = scmp.eq.s32.totalorder %s26, 7
      %p96 = por %p94, %p95
      %p98 = scmp.ne.s32.totalorder %s81, %s97
      %p99 = scmp.eq.s32.totalorder %s26, 0
      %p100 = por %p98, %p99
      %s101 = ssub.s32 %s20, %s27
      %p102 = scmp.eq.s32.totalorder %s101, 0
      %s104 = sadd.s32 %s103, 1
      %s105 = scalar_select %p102, %s103, %s104
      %p108 = pneg %p102
      %p109 = scmp.eq.s32.totalorder %s20, 7
      %p110 = por %p108, %p109
      %p111 = scmp.ne.s32.totalorder %s103, %s106
      %p112 = scmp.eq.s32.totalorder %s20, 0
      %p113 = por %p111, %p112
      %p114 = scmp.ne.s32.totalorder %s103, %s106
      %p115 = scmp.eq.s32.totalorder %s25, 7
      %p116 = por %p114, %p115
      %p117 = scmp.ne.s32.totalorder %s106, %s107
      %p118 = scmp.eq.s32.totalorder %s25, 0
      %p119 = por %p117, %p118
      %p120 = scmp.ne.s32.totalorder %s106, %s107
      %p121 = scmp.eq.s32.totalorder %s26, 7
      %p122 = por %p120, %p121
      %p124 = scmp.ne.s32.totalorder %s107, %s123
      %p125 = scmp.eq.s32.totalorder %s26, 0
      %p126 = por %p124, %p125
      %s128 = sadd.s32 %s127, 1
      %p131 = scmp.eq.s32.totalorder %s20, 7
      %p132 = scmp.ne.s32.totalorder %s127, %s129
      %p133 = scmp.eq.s32.totalorder %s20, 0
      %p134 = por %p132, %p133
      %p135 = scmp.ne.s32.totalorder %s127, %s129
      %p136 = scmp.eq.s32.totalorder %s25, 7
      %p137 = por %p135, %p136
      %p138 = scmp.ne.s32.totalorder %s129, %s130
      %p139 = scmp.eq.s32.totalorder %s25, 0
      %p140 = por %p138, %p139
      %p141 = scmp.ne.s32.totalorder %s129, %s130
      %p142 = scmp.eq.s32.totalorder %s26, 7
      %p143 = por %p141, %p142
      %p145 = scmp.ne.s32.totalorder %s130, %s144
      %p146 = scmp.eq.s32.totalorder %s26, 0
      %p147 = por %p145, %p146
      %s149 = sadd.s32 %s148, 1
      %p152 = scmp.eq.s32.totalorder %s20, 7
      %p153 = scmp.ne.s32.totalorder %s148, %s150
      %p154 = scmp.eq.s32.totalorder %s20, 0
      %p155 = por %p153, %p154
      %p156 = scmp.ne.s32.totalorder %s148, %s150
      %p157 = scmp.eq.s32.totalorder %s25, 7
      %p158 = por %p156, %p157
      %p159 = scmp.ne.s32.totalorder %s150, %s151
      %p160 = scmp.eq.s32.totalorder %s25, 0
      %p161 = por %p159, %p160
      %p162 = scmp.ne.s32.totalorder %s150, %s151
      %p163 = scmp.eq.s32.totalorder %s26, 7
      %p164 = por %p162, %p163
      %p166 = scmp.ne.s32.totalorder %s151, %s165
      %p167 = scmp.eq.s32.totalorder %s26, 0
      %p168 = por %p166, %p167
      %s170 = sadd.s32 %s169, 1
      %p173 = scmp.eq.s32.totalorder %s20, 7
      %p174 = scmp.ne.s32.totalorder %s169, %s171
      %p175 = scmp.eq.s32.totalorder %s20, 0
      %p176 = por %p174, %p175
      %p177 = scmp.ne.s32.totalorder %s169, %s171
      %p178 = scmp.eq.s32.totalorder %s25, 7
      %p179 = por %p177, %p178
      %p180 = scmp.ne.s32.totalorder %s171, %s172
      %p181 = scmp.eq.s32.totalorder %s25, 0
      %p182 = por %p180, %p181
      %p183 = scmp.ne.s32.totalorder %s171, %s172
      %p184 = scmp.eq.s32.totalorder %s26, 7
      %p185 = por %p183, %p184
      %p187 = scmp.ne.s32.totalorder %s172, %s186
      %p188 = scmp.eq.s32.totalorder %s26, 0
      %p189 = por %p187, %p188
      %s190 = ssub.s32 %s20, %s27
      %p191 = scmp.eq.s32.totalorder %s190, 0
      %s193 = sadd.s32 %s192, 1
      %s194 = scalar_select %p191, %s192, %s193
      %p197 = pneg %p191
      %p198 = scmp.eq.s32.totalorder %s20, 7
      %p199 = por %p197, %p198
      %p200 = scmp.ne.s32.totalorder %s192, %s195
      %p201 = scmp.eq.s32.totalorder %s20, 0
      %p202 = por %p200, %p201
      %p203 = scmp.ne.s32.totalorder %s192, %s195
      %p204 = scmp.eq.s32.totalorder %s25, 7
      %p205 = por %p203, %p204
      %p206 = scmp.ne.s32.totalorder %s195, %s196
      %p207 = scmp.eq.s32.totalorder %s25, 0
      %p208 = por %p206, %p207
      %p209 = scmp.ne.s32.totalorder %s195, %s196
      %p210 = scmp.eq.s32.totalorder %s26, 7
      %p211 = por %p209, %p210
      %p213 = scmp.ne.s32.totalorder %s196, %s212
      %p214 = scmp.eq.s32.totalorder %s26, 0
      %p215 = por %p213, %p214
      %s217 = sadd.s32 %s216, 1
      %p220 = scmp.eq.s32.totalorder %s20, 7
      %p221 = scmp.ne.s32.totalorder %s216, %s218
      %p222 = scmp.eq.s32.totalorder %s20, 0
      %p223 = por %p221, %p222
      %p224 = scmp.ne.s32.totalorder %s216, %s218
      %p225 = scmp.eq.s32.totalorder %s25, 7
      %p226 = por %p224, %p225
      %p227 = scmp.ne.s32.totalorder %s218, %s219
      %p228 = scmp.eq.s32.totalorder %s25, 0
      %p229 = por %p227, %p228
      %p230 = scmp.ne.s32.totalorder %s218, %s219
      %p231 = scmp.eq.s32.totalorder %s26, 7
      %p232 = por %p230, %p231
      %p234 = scmp.ne.s32.totalorder %s219, %s233
      %p235 = scmp.eq.s32.totalorder %s26, 0
      %p236 = por %p234, %p235
      %p237 = scmp.le.s32.totalorder 1, %s20
      %p238 = scmp.lt.s32.totalorder %s20, 9
      %p239 = pnand %p237, %p238
      %p240 = pneg %p239
      // Predicated region
      $region9: #{tpu_custom_call.1} parent=5 // pred_check
        _
      $region10: #{tpu_custom_call.1} parent=5 // pred_check_branch
        %242 = sbr.rel (%p239) target = $region12
      $region11: #{tpu_custom_call.1} parent=5 // pred_region
        %s243 = ssub.s32 %s20, 1
        // Predicated region
        $region13: #{tpu_custom_call.1} parent=11 // pred_check
          %p244 = pneg %p41
        $region14: #{tpu_custom_call.1} parent=11 // pred_check_branch
          %246 = sbr.rel (%p244) target = $region16
        $region15: #{tpu_custom_call.1} parent=11 // pred_region
          _
        $region16: #{tpu_custom_call.1} parent=11 // pred_fallthru
          _
        // Predicated region
        $region17: #{tpu_custom_call.1} parent=11 // pred_check
          %p247 = pneg %p140
        $region18: #{tpu_custom_call.1} parent=11 // pred_check_branch
          %249 = sbr.rel (%p247) target = $region20
        $region19: #{tpu_custom_call.1} parent=11 // pred_region
          _
        $region20: #{tpu_custom_call.1} parent=11 // pred_fallthru
          _
        // Predicated region
        $region21: #{tpu_custom_call.1} parent=11 // pred_check
          %p250 = pneg %p161
        $region22: #{tpu_custom_call.1} parent=11 // pred_check_branch
          %252 = sbr.rel (%p250) target = $region24
        $region23: #{tpu_custom_call.1} parent=11 // pred_region
          _
        $region24: #{tpu_custom_call.1} parent=11 // pred_fallthru
          _
        // Predicated region
        $region25: #{tpu_custom_call.1} parent=11 // pred_check
          %p253 = pneg %p182
        $region26: #{tpu_custom_call.1} parent=11 // pred_check_branch
          %255 = sbr.rel (%p253) target = $region28
        $region27: #{tpu_custom_call.1} parent=11 // pred_region
          _
        $region28: #{tpu_custom_call.1} parent=11 // pred_fallthru
          _
      $region12: #{tpu_custom_call.1} parent=5 // pred_fallthru
        _
      %p256 = scmp.lt.s32.totalorder %s20, 8
      // Predicated region
      $region29: #{tpu_custom_call.1} parent=5 // pred_check
        %p257 = pneg %p256
      $region30: #{tpu_custom_call.1} parent=5 // pred_check_branch
        %259 = sbr.rel (%p257) target = $region32
      $region31: #{tpu_custom_call.1} parent=5 // pred_region
        // Predicated region
        $region33: #{tpu_custom_call.1} parent=31 // pred_check
          %p260 = pneg %p61
        $region34: #{tpu_custom_call.1} parent=31 // pred_check_branch
          %262 = sbr.rel (%p260) target = $region36
        $region35: #{tpu_custom_call.1} parent=31 // pred_region
          %p263 = scmp.lt.s32.totalorder %s20, 7
          %s264 = scalar_select %p263, %s20, 7
          %s265 = scalar_lea.vmem %s1, %s264
        $region36: #{tpu_custom_call.1} parent=31 // pred_fallthru
          _
        // Predicated region
        $region37: #{tpu_custom_call.1} parent=31 // pred_check
          %p266 = pneg %p87
        $region38: #{tpu_custom_call.1} parent=31 // pred_check_branch
          %268 = sbr.rel (%p266) target = $region40
        $region39: #{tpu_custom_call.1} parent=31 // pred_region
          %p269 = scmp.lt.s32.totalorder %s20, 7
          %s270 = scalar_select %p269, %s20, 7
          %s271 = scalar_lea.vmem %s2, %s270
        $region40: #{tpu_custom_call.1} parent=31 // pred_fallthru
          _
        // Predicated region
        $region41: #{tpu_custom_call.1} parent=31 // pred_check
          %p272 = pneg %p113
        $region42: #{tpu_custom_call.1} parent=31 // pred_check_branch
          %274 = sbr.rel (%p272) target = $region44
        $region43: #{tpu_custom_call.1} parent=31 // pred_region
          %p275 = scmp.lt.s32.totalorder %s20, 7
          %s276 = scalar_select %p275, %s20, 7
          %s277 = smul.addr %s276, 4
          %s278 = smul.addr %s277, 8
          %s279 = scalar_lea.vmem %s3, %s278
        $region44: #{tpu_custom_call.1} parent=31 // pred_fallthru
          _
      $region32: #{tpu_custom_call.1} parent=5 // pred_fallthru
        _
      %p280 = scmp.le.s32.totalorder 1, %s20
      %p281 = scmp.lt.s32.totalorder %s20, 9
      %p282 = pnand %p280, %p281
      %p283 = pneg %p282
      // Predicated region
      $region45: #{tpu_custom_call.1} parent=5 // pred_check
        _
      $region46: #{tpu_custom_call.1} parent=5 // pred_check_branch
        %285 = sbr.rel (%p282) target = $region48
      $region47: #{tpu_custom_call.1} parent=5 // pred_region
        %s286 = ssub.s32 %s20, 1
        %p287 = pneg %p41
        %p288 = pneg %p38
        %p289 = scmp.lt.s32.totalorder %s25, 7
        %s290 = scalar_select %p289, %s25, 7
        %s291 = scalar_lea.vmem %s1, %s290
        %p292 = pneg %p67
        %p293 = pneg %p64
        %p294 = scmp.lt.s32.totalorder %s25, 7
        %s295 = scalar_select %p294, %s25, 7
        %s296 = scalar_lea.vmem %s2, %s295
        %p297 = pneg %p93
        %p298 = pneg %p90
        %p299 = scmp.lt.s32.totalorder %s25, 7
        %s300 = scalar_select %p299, %s25, 7
        %s301 = smul.addr %s300, 4
        %s302 = smul.addr %s301, 8
        %s303 = scalar_lea.vmem %s3, %s302
        %p304 = pneg %p119
        %p305 = pneg %p116
        %p306 = pneg %p140
        %p307 = pneg %p137
        %p308 = pneg %p161
        %p309 = pneg %p158
        %p310 = pneg %p182
        %p311 = pneg %p179
        %p312 = pneg %p208
        %p313 = pneg %p205
        %s314 = sand.u32 %s195, 1
        %s315 = scalar_lea.sflag [#allocation5], %s314
        %s316 = sand.u32 %s195, 1
        %s317 = scalar_lea.vmem [#allocation4], %s316
        %p318 = pneg %p229
        %p319 = pneg %p226
        %p320 = scmp.lt.s32.totalorder %s25, 7
        %s321 = scalar_select %p320, %s25, 7
        %s322 = scalar_lea.vmem %s1, %s321
        %p323 = scmp.lt.s32.totalorder %s25, 7
        %s324 = scalar_select %p323, %s25, 7
        %s325 = scalar_lea.vmem %s2, %s324
        %p326 = scmp.lt.s32.totalorder %s25, 7
        %s327 = scalar_select %p326, %s25, 7
        %s328 = smul.addr %s327, 4
        %s329 = smul.addr %s328, 8
        %s330 = scalar_lea.vmem %s3, %s329
        %p331 = scmp.eq.s32.totalorder %s25, 0
        // Predicated region
        $region49: #{tpu_custom_call.1} parent=47 // pred_check
          %p332 = pneg %p331
        $region50: #{tpu_custom_call.1} parent=47 // pred_check_branch
          %334 = sbr.rel (%p332) target = $region52
        $region51: #{tpu_custom_call.1} parent=47 // pred_region
          %v335 = vld [vmem:[%s6] sm:$0xff]
          %v336 = vld [vmem:[%s6 + $0x8] sm:$0xff]
          %v337 = vld [vmem:[%s6 + $0x10] sm:$0xff]
          %v338 = vld [vmem:[%s6 + $0x18] sm:$0xff]
          %vm339 = vcmask 261120
          %340 = vst.msk [vmem:[#allocation2] sm:$0xff] %vm339, %v335
          %341 = vst.msk [vmem:[#allocation2 + $0x8] sm:$0xff] %vm339, %v336
          %342 = vst.msk [vmem:[#allocation2 + $0x10] sm:$0xff] %vm339, %v337
          %343 = vst.msk [vmem:[#allocation2 + $0x18] sm:$0xff] %vm339, %v338
        $region52: #{tpu_custom_call.1} parent=47 // pred_fallthru
          _
        %s344 = sld [smem:[#allocation3]]
        %v345 = vld [vmem:[%s322] sm:$0x1]
        %v346 = vld [vmem:[%s325] sm:$0x1]
        %v347 = vld [vmem:[%s330] sm:$0xff]
        %v348 = vld [vmem:[%s330 + $0x8] sm:$0xff]
        %v349 = vld [vmem:[%s330 + $0x10] sm:$0xff]
        %v350 = vld [vmem:[%s330 + $0x18] sm:$0xff]
        %v351 = vld [vmem:[%s4] sm:$0xff]
        %v352 = vld [vmem:[%s4 + $0x8] sm:$0xff]
        %v353 = vld [vmem:[%s4 + $0x10] sm:$0xff]
        %v354 = vld [vmem:[%s4 + $0x18] sm:$0xff]
        %v355 = vld [vmem:[%s5] sm:$0xff]
        %v356 = vld [vmem:[%s5 + $0x8] sm:$0xff]
        %v357 = vld [vmem:[%s5 + $0x10] sm:$0xff]
        %v358 = vld [vmem:[%s5 + $0x18] sm:$0xff]
        %v359 = vld [vmem:[#allocation2] sm:$0xff]
        %v360 = vld [vmem:[#allocation2 + $0x8] sm:$0xff]
        %v361 = vld [vmem:[#allocation2 + $0x10] sm:$0xff]
        %v362 = vld [vmem:[#allocation2 + $0x18] sm:$0xff]
        %vm363 = vcmp.ne.f32.partialorder %v345, 0.0
        %v364 = vsel %vm363, 1, 0
        %v365 = vcvt.s32.f32 %v364
        %v366 = vmul.f32 %v355, %v359
        %v367 = vmul.f32 %v356, %v360
        %v368 = vmul.f32 %v357, %v361
        %v369 = vmul.f32 %v358, %v362
        %v370 = vadd.f32 %v351, %v366
        %v371 = vadd.f32 %v352, %v367
        %v372 = vadd.f32 %v353, %v368
        %v373 = vadd.f32 %v354, %v369
        %vm374 = vcmask 261120
        %v376 = vsel %vm374, %v346, 0
        %378 = vmatprep.subr.mxu0 0.0
        %379 = vmatpush1.msra.mxu0 %v370
        %380 = vmatprep.subr.mxu0 0.0
        %381 = vmatpush1.msra.mxu0 %v371
        %382 = vmatprep.subr.mxu0 0.0
        %383 = vmatpush1.msra.mxu0 %v372
        %384 = vmatprep.subr.mxu0 0.0
        %385 = vmatpush1.msra.mxu0 %v373
        %386 = vmatprep.subr.mxu0 0.0
        %387 = vmatpush1.msra.mxu0 0.0
        %388 = vmatprep.subr.mxu0 0.0
        %389 = vmatpush1.msra.mxu0 0.0
        %390 = vmatprep.subr.mxu0 0.0
        %391 = vmatpush1.msra.mxu0 0.0
        %392 = vmatprep.subr.mxu0 0.0
        %393 = vmatpush1.msra.mxu0 0.0
        %394 = vmatprep.subr.mxu0 0.0
        %395 = vmatpush1.msra.mxu0 0.0
        %396 = vmatprep.subr.mxu0 0.0
        %397 = vmatpush1.msra.mxu0 0.0
        %398 = vmatprep.subr.mxu0 0.0
        %399 = vmatpush1.msra.mxu0 0.0
        %400 = vmatprep.subr.mxu0 0.0
        %401 = vmatpush1.msra.mxu0 0.0
        %402 = vmatprep.subr.mxu0 0.0
        %403 = vmatpush1.msra.mxu0 0.0
        %404 = vmatprep.subr.mxu0 0.0
        %405 = vmatpush1.msra.mxu0 0.0
        %406 = vmatprep.subr.mxu0 0.0
        %407 = vmatpush1.msra.mxu0 0.0
        %408 = vmatprep.subr.mxu0 0.0
        %409 = vmatpush1.msra.mxu0 0.0
        %410 = vmatprep.subr.mxu0 0.0
        %411 = vmatpush1.msra.mxu0 0.0
        %412 = vmatprep.subr.mxu0 0.0
        %413 = vmatpush1.msra.mxu0 0.0
        %414 = vmatprep.subr.mxu0 0.0
        %415 = vmatpush1.msra.mxu0 0.0
        %416 = vmatprep.subr.mxu0 0.0
        %417 = vmatpush1.msra.mxu0 0.0
        %418 = vmatprep.subr.mxu0 0.0
        %419 = vmatpush1.msra.mxu0 0.0
        %420 = vmatprep.subr.mxu0 0.0
        %421 = vmatpush1.msra.mxu0 0.0
        %422 = vmatprep.subr.mxu0 0.0
        %423 = vmatpush1.msra.mxu0 0.0
        %424 = vmatprep.subr.mxu0 0.0
        %425 = vmatpush1.msra.mxu0 0.0
        %426 = vmatprep.subr.mxu0 0.0
        %427 = vmatpush1.msra.mxu0 0.0
        %428 = vmatprep.subr.mxu0 0.0
        %429 = vmatpush1.msra.mxu0 0.0
        %430 = vmatprep.subr.mxu0 0.0
        %431 = vmatpush1.msra.mxu0 0.0
        %432 = vmatprep.subr.mxu0 0.0
        %433 = vmatpush1.msra.mxu0 0.0
        %434 = vmatprep.subr.mxu0 0.0
        %435 = vmatpush1.msra.mxu0 0.0
        %436 = vmatprep.subr.mxu0 0.0
        %437 = vmatpush1.msra.mxu0 0.0
        %438 = vmatprep.subr.mxu0 0.0
        %439 = vmatpush1.msra.mxu0 0.0
        %440 = vmatprep.subr.mxu0 0.0
        %441 = vmatpush1.msra.mxu0 0.0
        %442 = vmatprep.mubr.f32.mxu0 0.0
        %443 = vmatmul.mubr.f32.gmra.mrb[0].mxu0 %v376
        %v444 = vpop.f32.mrb[0].mxu0
        %v445 = vadd.f32 0.0, %v444
        %v446 = vpop.f32.mrb[0].mxu0
        %447 = vdwg.mxu0
        %v448 = vtanh.pop %v445
        %v449 = vsub.f32 1.0, %v365
        %v450 = vmul.f32 %v448, %v449
        %v451 = vmul.f32 %v345, %v365
        %v452 = vadd.f32 %v450, %v451
        %454 = vset.pattern.permute.xlu0 0
        %455 = vperm.xlu0 %454, %v347
        %v456 = vpop.permute.xlu0 %455
        %459 = vset.pattern.permute.xlu0 0
        %460 = vperm.xlu0 %459, %v348
        %v461 = vpop.permute.xlu0 %460
        %464 = vset.pattern.permute.xlu0 0
        %465 = vperm.xlu0 %464, %v349
        %v466 = vpop.permute.xlu0 %465
        %469 = vset.pattern.permute.xlu0 0
        %470 = vperm.xlu0 %469, %v350
        %v471 = vpop.permute.xlu0 %470
        %v473 = vlaneseq
        %v474 = vshrl.u32 %v473, 7
        %v475 = vsub.s32 0, %v474
        %v476 = vrot.slane %v452, %v475
        %v477 = vmul.f32 %v456, %v476
        %v478 = vmul.f32 %v461, %v476
        %v479 = vmul.f32 %v466, %v476
        %v480 = vmul.f32 %v471, %v476
        %v481 = vstv %s344
        %v482 = vmul.f32 %v477, %v481
        %v483 = vmul.f32 %v478, %v481
        %v484 = vmul.f32 %v479, %v481
        %v485 = vmul.f32 %v480, %v481
        %s486 = ssub.f32 1.0, %s344
        %v487 = vstv %s486
        %v488 = vmul.f32 %v487, %v359
        %v489 = vmul.f32 %v487, %v360
        %v490 = vmul.f32 %v487, %v361
        %v491 = vmul.f32 %v487, %v362
        %v492 = vadd.f32 %v482, %v488
        %v493 = vadd.f32 %v483, %v489
        %v494 = vadd.f32 %v484, %v490
        %v495 = vadd.f32 %v485, %v491
        %vm496 = vcmask 253952
        %497 = vst.msk [vmem:[%s317] sm:$0x1] %vm496, %v452
        %498 = vst.msk [vmem:[#allocation2] sm:$0xff] %vm374, %v492
        %499 = vst.msk [vmem:[#allocation2 + $0x8] sm:$0xff] %vm374, %v493
        %500 = vst.msk [vmem:[#allocation2 + $0x10] sm:$0xff] %vm374, %v494
        %501 = vst.msk [vmem:[#allocation2 + $0x18] sm:$0xff] %vm374, %v495
        %p502 = scmp.eq.s32.totalorder %s25, 7
        // Predicated region
        $region53: #{tpu_custom_call.1} parent=47 // pred_check
          %p503 = pneg %p502
        $region54: #{tpu_custom_call.1} parent=47 // pred_check_branch
          %505 = sbr.rel (%p503) target = $region56
        $region55: #{tpu_custom_call.1} parent=47 // pred_region
          %v506 = vld [vmem:[#allocation2] sm:$0xff]
          %v507 = vld [vmem:[#allocation2 + $0x8] sm:$0xff]
          %v508 = vld [vmem:[#allocation2 + $0x10] sm:$0xff]
          %v509 = vld [vmem:[#allocation2 + $0x18] sm:$0xff]
          %510 = vst.msk [vmem:[#allocation6] sm:$0xff] %vm374, %v506
          %511 = vst.msk [vmem:[#allocation6 + $0x8] sm:$0xff] %vm374, %v507
          %512 = vst.msk [vmem:[#allocation6 + $0x10] sm:$0xff] %vm374, %v508
          %513 = vst.msk [vmem:[#allocation6 + $0x18] sm:$0xff] %vm374, %v509
        $region56: #{tpu_custom_call.1} parent=47 // pred_fallthru
          _
        %s514 = sand.u32 %s195, 1
        %s515 = scalar_lea.sflag [#allocation5], %s514
        %s516 = sand.u32 %s195, 1
        %s517 = scalar_lea.vmem [#allocation4], %s516
        // Predicated region
        $region57: #{tpu_custom_call.1} parent=47 // pred_check
          %p518 = pneg %p205
        $region58: #{tpu_custom_call.1} parent=47 // pred_check_branch
          %520 = sbr.rel (%p518) target = $region60
        $region59: #{tpu_custom_call.1} parent=47 // pred_region
          %s522 = ssub.s32 16, 16
          %523 = vsyncadd %s515, %s522
          %s524 = smul.addr %s25, 16
          %s525 = scalar_lea.hbm %s7, %s524
          %s527 = sshll.u32 %s517, 4
          %s528 = int_to_ptr.vmem [resolvable:$true] %s527
          %530 = dma.vmem_to_hbm [thread:$0]  %s528, 16, %s525, %s515
        $region60: #{tpu_custom_call.1} parent=47 // pred_fallthru
          _
        // Predicated region
        $region61: #{tpu_custom_call.1} parent=47 // pred_check
          %p531 = pneg %p226
        $region62: #{tpu_custom_call.1} parent=47 // pred_check_branch
          %533 = sbr.rel (%p531) target = $region64
        $region63: #{tpu_custom_call.1} parent=47 // pred_region
          %s535 = ssub.s32 512, 512
          %536 = vsyncadd [#allocation7], %s535
          %s537 = sshll.u32 [#allocation6], 4
          %s538 = int_to_ptr.vmem [resolvable:$true] %s537
          %543 = dma.vmem_to_hbm [thread:$0]  %s538, 512, %s8, [#allocation7], 128, 128, 8
        $region64: #{tpu_custom_call.1} parent=47 // pred_fallthru
          _
        // Predicated region
        $region65: #{tpu_custom_call.1} parent=47 // pred_check
          %p544 = pneg %p226
        $region66: #{tpu_custom_call.1} parent=47 // pred_check_branch
          %546 = sbr.rel (%p544) target = $region68
        $region67: #{tpu_custom_call.1} parent=47 // pred_region
          %547 = dma.done [#allocation7], 512
        $region68: #{tpu_custom_call.1} parent=47 // pred_fallthru
          _
      $region48: #{tpu_custom_call.1} parent=5 // pred_fallthru
        _
      %p548 = scmp.le.s32.totalorder 2, %s20
      // Predicated region
      $region69: #{tpu_custom_call.1} parent=5 // pred_check
        %p549 = pneg %p548
      $region70: #{tpu_custom_call.1} parent=5 // pred_check_branch
        %551 = sbr.rel (%p549) target = $region72
      $region71: #{tpu_custom_call.1} parent=5 // pred_region
        %s552 = ssub.s32 %s20, 2
        // Predicated region
        $region73: #{tpu_custom_call.1} parent=71 // pred_check
          %p553 = pneg %p211
        $region74: #{tpu_custom_call.1} parent=71 // pred_check_branch
          %555 = sbr.rel (%p553) target = $region76
        $region75: #{tpu_custom_call.1} parent=71 // pred_region
          %s556 = sand.u32 %s196, 1
          %s557 = scalar_lea.sflag [#allocation5], %s556
          %s558 = sand.u32 %s196, 1
          %s559 = scalar_lea.vmem [#allocation4], %s558
          %560 = dma.done %s557, 16
        $region76: #{tpu_custom_call.1} parent=71 // pred_fallthru
          _
      $region72: #{tpu_custom_call.1} parent=5 // pred_fallthru
        _
    $region6: #{tpu_custom_call.1} parent=1 // loop_footer
      %s24 = sadd.s32 1, %s20
    $region7: #{tpu_custom_call.1} parent=1 // loop_footer_branch
      %19 = sbr.rel target = $region3
    $region8: #{tpu_custom_call.1} parent=1 // loop_exit
      _
    %561 = vsyncpa [#allocation5], 1
    %s562 = scalar_lea.sflag [#allocation5], 1
    %563 = vsyncpa %s562, 1
    %564 = vsyncpa [#allocation7], 1

</llo_original>
